<compile_context>
chip_gen: v7x
topology: tpu7x:2x2x1
jax: 0.10.0
libtpu: 0.0.40
codegen_flags: <defaults>
</compile_context>

<pallas_src>
import functools

import numpy as np
import jax
import jax.numpy as jnp
from jax.experimental import pallas as pl
from jax.experimental.pallas import tpu as pltpu

LANES = 128  # supports B * S <= 128 flattened positions


def _random_delete_gate_kernel(n_ref, keys_row_ref, keys_col_ref, out_ref, *, scale, n_valid):
    """Rank 128 iid random keys with one all-pairs compare; select the top-n.

    n_ref:        (1,)      int32 SMEM   dynamic number of deletions
    keys_row_ref: (1, 128)  f32   VMEM   key[j] along the lane axis
    keys_col_ref: (128, 1)  f32   VMEM   same keys along the sublane axis (pre-transposed)
    out_ref:      (1, 128)  f32   VMEM   lane-dense mask; first n_valid lanes are real positions
    """
    keys_row = keys_row_ref[...]    # (1, LANES)
    keys_col = keys_col_ref[...]    # (LANES, 1)

    sub = jax.lax.broadcasted_iota(jnp.int32, (LANES, LANES), 0)   # i (sublane index)
    lane = jax.lax.broadcasted_iota(jnp.int32, (LANES, LANES), 1)  # j (lane index)

    # beats[i, j] = key[i] > key[j]  (ties broken by index -> total order), and i must be a
    # real (valid) position.  All-pairs compare on the VPU; diagonal is always False.
    beats = (keys_col > keys_row) | ((keys_col == keys_row) & (sub > lane))
    beats = beats & (sub < n_valid)

    # rank[j] = #{ valid i : i beats j }.  Single cross-sublane reduce; counts <= 127 so
    # f32 accumulation is exact.
    rank = jnp.sum(beats.astype(jnp.float32), axis=0, keepdims=True)   # (1, LANES)

    lane_j = jax.lax.broadcasted_iota(jnp.int32, (1, LANES), 1)
    n = n_ref[0].astype(jnp.float32)
    # The n valid positions with the largest keys have ranks 0..n-1 -> exactly n selected.
    selected = (rank < n) & (lane_j < n_valid)
    out_ref[...] = jnp.where(selected, jnp.float32(scale), jnp.float32(0.0))


def random_delete_gate(hidden_states, input_ids, seed, *, sigmoid_mask_scale,
                       random_deletion_probability):
    """Equivalent of RandomDeleteGate.forward. Returns (delete_gate_mask, delete_gate_mask)."""
    del input_ids  # unused, as in the PyTorch module
    B, S = hidden_states.shape[0], hidden_states.shape[1]
    N = B * S
    assert N <= LANES, "this synthetic kernel supports B * S <= 128"
    # TODO(synk): for B*S > 128, tile the all-pairs compare over (sublane, lane) blocks.

    # Host-side scalar sampling, matching the PyTorch module's np.random.normal call.
    deletion_percentage = np.random.normal(loc=random_deletion_probability, scale=0.05)
    n_deletions = int(deletion_percentage * N)
    n_deletions = max(0, min(n_deletions, N))  # clamp (randperm[:n] never exceeds total)

    # iid uniform keys -> top-n is a uniformly random n-subset (same law as randperm[:n]).
    # Generated XLA-side; the two layouts avoid any in-kernel transpose.
    keys = jax.random.uniform(jax.random.PRNGKey(seed), (LANES,), dtype=jnp.float32)
    keys_row = keys.reshape(1, LANES)
    keys_col = keys.reshape(LANES, 1)
    n_arr = jnp.asarray([n_deletions], dtype=jnp.int32)

    kernel = functools.partial(
        _random_delete_gate_kernel, scale=float(sigmoid_mask_scale), n_valid=N)

    out = pl.pallas_call(
        kernel,
        out_shape=jax.ShapeDtypeStruct((1, LANES), jnp.float32),
        in_specs=[
            pl.BlockSpec(memory_space=pltpu.MemorySpace.SMEM),   # n_deletions scalar
            pl.BlockSpec(memory_space=pltpu.MemorySpace.VMEM),   # keys, lane-major
            pl.BlockSpec(memory_space=pltpu.MemorySpace.VMEM),   # keys, sublane-major
        ],
        out_specs=pl.BlockSpec(memory_space=pltpu.MemorySpace.VMEM),
    )(n_arr, keys_row, keys_col)

    delete_gate_mask = out[0, :N].reshape(B, S, 1)
    return delete_gate_mask, delete_gate_mask


class Config:
    sigmoid_mask_scale = -10.0
    random_deletion_probability = 0.5


if __name__ == "__main__":
    cfg = Config()
    key = jax.random.PRNGKey(0)
    k1, k2, k3 = jax.random.split(key, 3)

    B, S, H = 2, 8, 32
    hidden_states = jax.random.normal(k1, (B, S, H), dtype=jnp.float32)
    input_ids = jax.random.randint(k2, (B, S), 0, 256, dtype=jnp.int32)
    seed = int(jax.random.randint(k3, (), 0, 2**31 - 1))

    # Replay the host-side draw so we can verify the mask has exactly n selected entries.
    np.random.seed(0)
    expected_pct = np.random.normal(loc=cfg.random_deletion_probability, scale=0.05)
    expected_n = max(0, min(int(expected_pct * B * S), B * S))

    np.random.seed(0)
    mask, mask2 = random_delete_gate(
        hidden_states, input_ids, seed,
        sigmoid_mask_scale=cfg.sigmoid_mask_scale,
        random_deletion_probability=cfg.random_deletion_probability)
    jax.block_until_ready(mask)

    assert mask.shape == (B, S, 1) and mask.dtype == jnp.float32
    vals = np.asarray(mask).reshape(-1)
    n_sel = int(np.sum(vals == np.float32(cfg.sigmoid_mask_scale)))
    n_zero = int(np.sum(vals == 0.0))
    assert n_sel + n_zero == B * S, "mask must contain only {0, sigmoid_mask_scale}"
    assert n_sel == expected_n, (n_sel, expected_n)
    assert np.array_equal(np.asarray(mask), np.asarray(mask2))
    print("KERNEL_OK")
</pallas_src>

<mosaic_0001>
module attributes {stable_mosaic.version = 11 : i64} {
  func.func @_random_delete_gate_kernel(%arg0: memref<1xi32, #tpu.memory_space<smem>>, %arg1: memref<1x128xf32, #tpu.memory_space<vmem>>, %arg2: memref<128x1xf32, #tpu.memory_space<vmem>>, %arg3: memref<1x128xf32, #tpu.memory_space<vmem>>) attributes {dimension_semantics = [], scalar_prefetch = 0 : i64, scratch_operands = 0 : i64, tpu.core_type = #tpu.core_type<tc>} {
    %c0 = arith.constant 0 : index
    %c0_0 = arith.constant 0 : index
    %0 = vector.load %arg1[%c0, %c0_0] : memref<1x128xf32, #tpu.memory_space<vmem>>, vector<1x128xf32>
    %c0_1 = arith.constant 0 : index
    %c0_2 = arith.constant 0 : index
    %1 = vector.load %arg2[%c0_1, %c0_2] : memref<128x1xf32, #tpu.memory_space<vmem>>, vector<128x1xf32>
    %2 = tpu.iota {dimensions = array<i32: 0>} : vector<128x128xi32>
    %3 = tpu.iota {dimensions = array<i32: 1>} : vector<128x128xi32>
    %4 = vector.broadcast %1 : vector<128x1xf32> to vector<128x128xf32>
    %5 = vector.broadcast %0 : vector<1x128xf32> to vector<128x128xf32>
    %6 = arith.cmpf ogt, %4, %5 : vector<128x128xf32>
    %7 = vector.broadcast %1 : vector<128x1xf32> to vector<128x128xf32>
    %8 = vector.broadcast %0 : vector<1x128xf32> to vector<128x128xf32>
    %9 = arith.cmpf oeq, %7, %8 : vector<128x128xf32>
    %10 = arith.cmpi sgt, %2, %3 : vector<128x128xi32>
    %11 = arith.andi %9, %10 : vector<128x128xi1>
    %12 = arith.ori %6, %11 : vector<128x128xi1>
    %c16_i32 = arith.constant 16 : i32
    %13 = vector.broadcast %c16_i32 : i32 to vector<128x128xi32>
    %14 = arith.cmpi slt, %2, %13 : vector<128x128xi32>
    %15 = arith.andi %12, %14 : vector<128x128xi1>
    %16 = arith.extui %15 : vector<128x128xi1> to vector<128x128xi32>
    %17 = arith.sitofp %16 : vector<128x128xi32> to vector<128x128xf32>
    %cst = arith.constant dense<0.000000e+00> : vector<128xf32>
    %18 = vector.multi_reduction <add>, %17, %cst [0] : vector<128x128xf32> to vector<128xf32>
    %19 = vector.shape_cast %18 : vector<128xf32> to vector<1x128xf32>
    %20 = tpu.iota {dimensions = array<i32: 1>} : vector<1x128xi32>
    %c0_3 = arith.constant 0 : index
    %21 = memref.load %arg0[%c0_3] : memref<1xi32, #tpu.memory_space<smem>>
    %22 = arith.sitofp %21 : i32 to f32
    %23 = vector.broadcast %22 : f32 to vector<1x128xf32>
    %24 = arith.cmpf olt, %19, %23 : vector<1x128xf32>
    %c16_i32_4 = arith.constant 16 : i32
    %25 = vector.broadcast %c16_i32_4 : i32 to vector<1x128xi32>
    %26 = arith.cmpi slt, %20, %25 : vector<1x128xi32>
    %27 = arith.andi %24, %26 : vector<1x128xi1>
    %cst_5 = arith.constant -1.000000e+01 : f32
    %cst_6 = arith.constant 0.000000e+00 : f32
    %28 = vector.broadcast %cst_5 : f32 to vector<1x128xf32>
    %29 = vector.broadcast %cst_6 : f32 to vector<1x128xf32>
    %30 = arith.select %27, %28, %29 : vector<1x128xi1>, vector<1x128xf32>
    %c0_7 = arith.constant 0 : index
    %c0_8 = arith.constant 0 : index
    %31 = vector.load %arg3[%c0_7, %c0_8] : memref<1x128xf32, #tpu.memory_space<vmem>>, vector<1x128xf32>
    tpu.vector_store %arg3[%c0_7, %c0_8], %30 {strides = array<i32>} : memref<1x128xf32, #tpu.memory_space<vmem>>, vector<1x128xf32>,
    return
  }
}

</mosaic_0001>

<llo_original>
// kernel: tpu_custom_call.1
$region0: #{tpu_custom_call.1}
  #allocation0 [shape = 'u32[]', space=smem, size = 0x4, offset = 0x4, fixed_abs, tag = 'smem constant byte address 0x4 - core index']
  #allocation1 [shape = 'u32[144,128]{1,0:T(1,128)}', space=vmem, size = 0x12000, scoped, tag = 'internal scratch']
  #allocation2 [shape = 's32[1]{0:T(128)S(6)}', space=smem, size = 0x200, scoped, tag = 'scoped memory for tpu_custom_call.1']
  %s0 = inlined_call_operand.<no memory space> [shape: s32[1], index: 0, kind: input, shape index: {}]
  %s1 = inlined_call_operand.vmem [shape: f32[1,128], index: 1, kind: input, shape index: {}]
  %s2 = inlined_call_operand.vmem [shape: f32[128,1], index: 2, kind: input, shape index: {}]
  %s3 = inlined_call_operand.hbm [shape: f32[1,128], index: 3, kind: output, shape index: {}]
  %s4 = sld [smem:[#allocation0]]
  $region22: #{tpu_custom_call.1} parent=0
    _
  %s6 = ssub.s32 1, %s4
  %s7 = scalar_select 0, %s6, %s4
  %8 = sst [smem:[#allocation2]] %s0
  $region1: #{tpu_custom_call.1} parent=0
    #allocation3 [shape = 'u8[512]{0}', space=vmem, size = 0x400, scoped, tag = 'output window, operand 0, single buffered']
    #allocation4 [shape = 's32[1]{0}', space=sflag, size = 0x4, scoped, tag = 'scoped memory for tpu_custom_call.1']
    %9 = vsyncpa [#allocation4], 0
    // Predicated region
    $region2: #{tpu_custom_call.1} parent=1 // pred_check
      _
    $region3: #{tpu_custom_call.1} parent=1 // pred_check_branch
      %11 = sbr.rel (0) target = $region5
    $region4: #{tpu_custom_call.1} parent=1 // pred_region
      _
    $region5: #{tpu_custom_call.1} parent=1 // pred_fallthru
      _
    // Predicated region
    $region6: #{tpu_custom_call.1} parent=1 // pred_check
      _
    $region7: #{tpu_custom_call.1} parent=1 // pred_check_branch
      %13 = sbr.rel (0) target = $region9
    $region8: #{tpu_custom_call.1} parent=1 // pred_region
      _
    $region9: #{tpu_custom_call.1} parent=1 // pred_fallthru
      _
    // Predicated region
    $region10: #{tpu_custom_call.1} parent=1 // pred_check
      _
    $region11: #{tpu_custom_call.1} parent=1 // pred_check_branch
      %15 = sbr.rel (0) target = $region13
    $region12: #{tpu_custom_call.1} parent=1 // pred_region
      _
    $region13: #{tpu_custom_call.1} parent=1 // pred_fallthru
      _
    %v16 = vld [vmem:[%s1] sm:$0x1]
    %v17 = vld [vmem:[%s2] sm:$0xff]
    %v18 = vld [vmem:[%s2 + $0x8] sm:$0xff]
    %v19 = vld [vmem:[%s2 + $0x10] sm:$0xff]
    %v20 = vld [vmem:[%s2 + $0x18] sm:$0xff]
    %v21 = vld [vmem:[%s2 + $0x20] sm:$0xff]
    %v22 = vld [vmem:[%s2 + $0x28] sm:$0xff]
    %v23 = vld [vmem:[%s2 + $0x30] sm:$0xff]
    %v24 = vld [vmem:[%s2 + $0x38] sm:$0xff]
    %v25 = vld [vmem:[%s2 + $0x40] sm:$0xff]
    %v26 = vld [vmem:[%s2 + $0x48] sm:$0xff]
    %v27 = vld [vmem:[%s2 + $0x50] sm:$0xff]
    %v28 = vld [vmem:[%s2 + $0x58] sm:$0xff]
    %v29 = vld [vmem:[%s2 + $0x60] sm:$0xff]
    %v30 = vld [vmem:[%s2 + $0x68] sm:$0xff]
    %v31 = vld [vmem:[%s2 + $0x70] sm:$0xff]
    %v32 = vld [vmem:[%s2 + $0x78] sm:$0xff]
    %v33 = vlaneseq
    %v34 = vshrl.u32 %v33, 7
    %v35 = vadd.s32 %v34, 8
    %v36 = vadd.s32 %v34, 16
    %v37 = vadd.s32 %v34, 24
    %v38 = vadd.s32 %v34, 32
    %v39 = vadd.s32 %v34, 40
    %v40 = vadd.s32 %v34, 48
    %v41 = vadd.s32 %v34, 56
    %v42 = vadd.s32 %v34, 64
    %v43 = vadd.s32 %v34, 72
    %v44 = vadd.s32 %v34, 80
    %v45 = vadd.s32 %v34, 88
    %v46 = vadd.s32 %v34, 96
    %v47 = vadd.s32 %v34, 104
    %v48 = vadd.s32 %v34, 112
    %v49 = vadd.s32 %v34, 120
    %v50 = vlaneseq
    %v51 = vand.u32 %v50, 127
    %53 = vset.pattern.permute.xlu0 0
    %54 = vperm.xlu0 %53, %v17
    %v55 = vpop.permute.xlu0 %54
    %58 = vset.pattern.permute.xlu0 0
    %59 = vperm.xlu0 %58, %v18
    %v60 = vpop.permute.xlu0 %59
    %63 = vset.pattern.permute.xlu0 0
    %64 = vperm.xlu0 %63, %v19
    %v65 = vpop.permute.xlu0 %64
    %68 = vset.pattern.permute.xlu0 0
    %69 = vperm.xlu0 %68, %v20
    %v70 = vpop.permute.xlu0 %69
    %73 = vset.pattern.permute.xlu0 0
    %74 = vperm.xlu0 %73, %v21
    %v75 = vpop.permute.xlu0 %74
    %78 = vset.pattern.permute.xlu0 0
    %79 = vperm.xlu0 %78, %v22
    %v80 = vpop.permute.xlu0 %79
    %83 = vset.pattern.permute.xlu0 0
    %84 = vperm.xlu0 %83, %v23
    %v85 = vpop.permute.xlu0 %84
    %88 = vset.pattern.permute.xlu0 0
    %89 = vperm.xlu0 %88, %v24
    %v90 = vpop.permute.xlu0 %89
    %93 = vset.pattern.permute.xlu0 0
    %94 = vperm.xlu0 %93, %v25
    %v95 = vpop.permute.xlu0 %94
    %98 = vset.pattern.permute.xlu0 0
    %99 = vperm.xlu0 %98, %v26
    %v100 = vpop.permute.xlu0 %99
    %103 = vset.pattern.permute.xlu0 0
    %104 = vperm.xlu0 %103, %v27
    %v105 = vpop.permute.xlu0 %104
    %108 = vset.pattern.permute.xlu0 0
    %109 = vperm.xlu0 %108, %v28
    %v110 = vpop.permute.xlu0 %109
    %113 = vset.pattern.permute.xlu0 0
    %114 = vperm.xlu0 %113, %v29
    %v115 = vpop.permute.xlu0 %114
    %118 = vset.pattern.permute.xlu0 0
    %119 = vperm.xlu0 %118, %v30
    %v120 = vpop.permute.xlu0 %119
    %123 = vset.pattern.permute.xlu0 0
    %124 = vperm.xlu0 %123, %v31
    %v125 = vpop.permute.xlu0 %124
    %128 = vset.pattern.permute.xlu0 0
    %129 = vperm.xlu0 %128, %v32
    %v130 = vpop.permute.xlu0 %129
    %v133 = vlaneseq
    %v134 = vshrl.u32 %v133, 7
    %v135 = vsub.s32 0, %v134
    %v136 = vrot.slane %v16, %v135
    %vm138 = vcmp.gt.f32.partialorder %v55, %v136
    %vm139 = vcmp.gt.f32.partialorder %v60, %v136
    %vm140 = vcmp.gt.f32.partialorder %v65, %v136
    %vm141 = vcmp.gt.f32.partialorder %v70, %v136
    %vm142 = vcmp.gt.f32.partialorder %v75, %v136
    %vm143 = vcmp.gt.f32.partialorder %v80, %v136
    %vm144 = vcmp.gt.f32.partialorder %v85, %v136
    %vm145 = vcmp.gt.f32.partialorder %v90, %v136
    %vm146 = vcmp.gt.f32.partialorder %v95, %v136
    %vm147 = vcmp.gt.f32.partialorder %v100, %v136
    %vm148 = vcmp.gt.f32.partialorder %v105, %v136
    %vm149 = vcmp.gt.f32.partialorder %v110, %v136
    %vm150 = vcmp.gt.f32.partialorder %v115, %v136
    %vm151 = vcmp.gt.f32.partialorder %v120, %v136
    %vm152 = vcmp.gt.f32.partialorder %v125, %v136
    %vm153 = vcmp.gt.f32.partialorder %v130, %v136
    %vm154 = vcmp.eq.f32.partialorder %v55, %v136
    %vm155 = vcmp.eq.f32.partialorder %v60, %v136
    %vm156 = vcmp.eq.f32.partialorder %v65, %v136
    %vm157 = vcmp.eq.f32.partialorder %v70, %v136
    %vm158 = vcmp.eq.f32.partialorder %v75, %v136
    %vm159 = vcmp.eq.f32.partialorder %v80, %v136
    %vm160 = vcmp.eq.f32.partialorder %v85, %v136
    %vm161 = vcmp.eq.f32.partialorder %v90, %v136
    %vm162 = vcmp.eq.f32.partialorder %v95, %v136
    %vm163 = vcmp.eq.f32.partialorder %v100, %v136
    %vm164 = vcmp.eq.f32.partialorder %v105, %v136
    %vm165 = vcmp.eq.f32.partialorder %v110, %v136
    %vm166 = vcmp.eq.f32.partialorder %v115, %v136
    %vm167 = vcmp.eq.f32.partialorder %v120, %v136
    %vm168 = vcmp.eq.f32.partialorder %v125, %v136
    %vm169 = vcmp.eq.f32.partialorder %v130, %v136
    %vm170 = vcmp.gt.s32.totalorder %v34, %v51
    %vm171 = vcmp.gt.s32.totalorder %v35, %v51
    %vm172 = vcmp.gt.s32.totalorder %v36, %v51
    %vm173 = vcmp.gt.s32.totalorder %v37, %v51
    %vm174 = vcmp.gt.s32.totalorder %v38, %v51
    %vm175 = vcmp.gt.s32.totalorder %v39, %v51
    %vm176 = vcmp.gt.s32.totalorder %v40, %v51
    %vm177 = vcmp.gt.s32.totalorder %v41, %v51
    %vm178 = vcmp.gt.s32.totalorder %v42, %v51
    %vm179 = vcmp.gt.s32.totalorder %v43, %v51
    %vm180 = vcmp.gt.s32.totalorder %v44, %v51
    %vm181 = vcmp.gt.s32.totalorder %v45, %v51
    %vm182 = vcmp.gt.s32.totalorder %v46, %v51
    %vm183 = vcmp.gt.s32.totalorder %v47, %v51
    %vm184 = vcmp.gt.s32.totalorder %v48, %v51
    %vm185 = vcmp.gt.s32.totalorder %v49, %v51
    %vm186 = vmand %vm154, %vm170
    %vm187 = vmand %vm155, %vm171
    %vm188 = vmand %vm156, %vm172
    %vm189 = vmand %vm157, %vm173
    %vm190 = vmand %vm158, %vm174
    %vm191 = vmand %vm159, %vm175
    %vm192 = vmand %vm160, %vm176
    %vm193 = vmand %vm161, %vm177
    %vm194 = vmand %vm162, %vm178
    %vm195 = vmand %vm163, %vm179
    %vm196 = vmand %vm164, %vm180
    %vm197 = vmand %vm165, %vm181
    %vm198 = vmand %vm166, %vm182
    %vm199 = vmand %vm167, %vm183
    %vm200 = vmand %vm168, %vm184
    %vm201 = vmand %vm169, %vm185
    %vm202 = vmor %vm138, %vm186
    %vm203 = vmor %vm139, %vm187
    %vm204 = vmor %vm140, %vm188
    %vm205 = vmor %vm141, %vm189
    %vm206 = vmor %vm142, %vm190
    %vm207 = vmor %vm143, %vm191
    %vm208 = vmor %vm144, %vm192
    %vm209 = vmor %vm145, %vm193
    %vm210 = vmor %vm146, %vm194
    %vm211 = vmor %vm147, %vm195
    %vm212 = vmor %vm148, %vm196
    %vm213 = vmor %vm149, %vm197
    %vm214 = vmor %vm150, %vm198
    %vm215 = vmor %vm151, %vm199
    %vm216 = vmor %vm152, %vm200
    %vm217 = vmor %vm153, %vm201
    %vm218 = vcmp.lt.s32.totalorder %v34, 16
    %vm219 = vcmp.lt.s32.totalorder %v35, 16
    %vm220 = vcmp.lt.s32.totalorder %v36, 16
    %vm221 = vcmp.lt.s32.totalorder %v37, 16
    %vm222 = vcmp.lt.s32.totalorder %v38, 16
    %vm223 = vcmp.lt.s32.totalorder %v39, 16
    %vm224 = vcmp.lt.s32.totalorder %v40, 16
    %vm225 = vcmp.lt.s32.totalorder %v41, 16
    %vm226 = vcmp.lt.s32.totalorder %v42, 16
    %vm227 = vcmp.lt.s32.totalorder %v43, 16
    %vm228 = vcmp.lt.s32.totalorder %v44, 16
    %vm229 = vcmp.lt.s32.totalorder %v45, 16
    %vm230 = vcmp.lt.s32.totalorder %v46, 16
    %vm231 = vcmp.lt.s32.totalorder %v47, 16
    %vm232 = vcmp.lt.s32.totalorder %v48, 16
    %vm233 = vcmp.lt.s32.totalorder %v49, 16
    %vm234 = vmand %vm202, %vm218
    %vm235 = vmand %vm203, %vm219
    %vm236 = vmand %vm204, %vm220
    %vm237 = vmand %vm205, %vm221
    %vm238 = vmand %vm206, %vm222
    %vm239 = vmand %vm207, %vm223
    %vm240 = vmand %vm208, %vm224
    %vm241 = vmand %vm209, %vm225
    %vm242 = vmand %vm210, %vm226
    %vm243 = vmand %vm211, %vm227
    %vm244 = vmand %vm212, %vm228
    %vm245 = vmand %vm213, %vm229
    %vm246 = vmand %vm214, %vm230
    %vm247 = vmand %vm215, %vm231
    %vm248 = vmand %vm216, %vm232
    %vm249 = vmand %vm217, %vm233
    %v250 = vsel %vm234, 1, 0
    %v251 = vsel %vm235, 1, 0
    %v252 = vsel %vm236, 1, 0
    %v253 = vsel %vm237, 1, 0
    %v254 = vsel %vm238, 1, 0
    %v255 = vsel %vm239, 1, 0
    %v256 = vsel %vm240, 1, 0
    %v257 = vsel %vm241, 1, 0
    %v258 = vsel %vm242, 1, 0
    %v259 = vsel %vm243, 1, 0
    %v260 = vsel %vm244, 1, 0
    %v261 = vsel %vm245, 1, 0
    %v262 = vsel %vm246, 1, 0
    %v263 = vsel %vm247, 1, 0
    %v264 = vsel %vm248, 1, 0
    %v265 = vsel %vm249, 1, 0
    %v266 = vcvt.s32.f32 %v250
    %v267 = vcvt.s32.f32 %v251
    %v268 = vcvt.s32.f32 %v252
    %v269 = vcvt.s32.f32 %v253
    %v270 = vcvt.s32.f32 %v254
    %v271 = vcvt.s32.f32 %v255
    %v272 = vcvt.s32.f32 %v256
    %v273 = vcvt.s32.f32 %v257
    %v274 = vcvt.s32.f32 %v258
    %v275 = vcvt.s32.f32 %v259
    %v276 = vcvt.s32.f32 %v260
    %v277 = vcvt.s32.f32 %v261
    %v278 = vcvt.s32.f32 %v262
    %v279 = vcvt.s32.f32 %v263
    %v280 = vcvt.s32.f32 %v264
    %v281 = vcvt.s32.f32 %v265
    %v282 = vadd.f32 %v266, %v267
    %v283 = vadd.f32 %v282, %v268
    %v284 = vadd.f32 %v283, %v269
    %v285 = vadd.f32 %v284, %v270
    %v286 = vadd.f32 %v285, %v271
    %v287 = vadd.f32 %v286, %v272
    %v288 = vadd.f32 %v287, %v273
    %v289 = vadd.f32 %v288, %v274
    %v290 = vadd.f32 %v289, %v275
    %v291 = vadd.f32 %v290, %v276
    %v292 = vadd.f32 %v291, %v277
    %v293 = vadd.f32 %v292, %v278
    %v294 = vadd.f32 %v293, %v279
    %v295 = vadd.f32 %v294, %v280
    %v296 = vadd.f32 %v295, %v281
    %v297 = vrot.slane %v296, 4
    %v298 = vadd.f32 %v296, %v297
    %v299 = vrot.slane %v298, 2
    %v300 = vadd.f32 %v298, %v299
    %v301 = vrot.slane %v300, 1
    %v302 = vadd.f32 %v300, %v301
    %s303 = sld [smem:[#allocation2]]
    %s304 = scvt.s32.f32 %s303
    %v305 = vstv %s304
    %vm306 = vcmp.lt.f32.partialorder %v302, %v305
    %vm307 = vcmp.lt.s32.totalorder %v51, 16
    %vm308 = vmand %vm306, %vm307
    %v309 = vsel %vm308, -10.0, 0.0
    %310 = vst [vmem:[#allocation3] sm:$0x1] %v309
    // Predicated region
    $region14: #{tpu_custom_call.1} parent=1 // pred_check
      _
    $region15: #{tpu_custom_call.1} parent=1 // pred_check_branch
      %312 = sbr.rel (0) target = $region17
    $region16: #{tpu_custom_call.1} parent=1 // pred_region
      %s314 = ssub.s32 16, 16
      %315 = vsyncadd [#allocation4], %s314
      %s317 = sshll.u32 [#allocation3], 4
      %s318 = int_to_ptr.vmem [resolvable:$true] %s317
      %320 = dma.vmem_to_hbm [thread:$0]  %s318, 16, %s3, [#allocation4]
    $region17: #{tpu_custom_call.1} parent=1 // pred_fallthru
      _
    // Predicated region
    $region18: #{tpu_custom_call.1} parent=1 // pred_check
      _
    $region19: #{tpu_custom_call.1} parent=1 // pred_check_branch
      %322 = sbr.rel (0) target = $region21
    $region20: #{tpu_custom_call.1} parent=1 // pred_region
      %323 = dma.done [#allocation4], 16
    $region21: #{tpu_custom_call.1} parent=1 // pred_fallthru
      _
    %324 = vsyncpa [#allocation4], 1

</llo_original>
